<compile_context>
chip_gen: v7x
topology: tpu7x:2x2x1
jax: 0.10.0
libtpu: 0.0.40
codegen_flags: <defaults>
</compile_context>

<pallas_src>
import jax
import jax.numpy as jnp
from jax.experimental import pallas as pl
from jax.experimental.pallas import tpu as pltpu


def _round_up(x, m):
    return (x + m - 1) // m * m


def _fused_fc_kernel(x_ref, w1_ref, b1_ref, w2_ref, b2_ref, o_ref):
    """One batch tile of: relu(x @ W1t + b1) @ W2t + b2.

    x_ref:  (tm, D_in)     VMEM
    w1_ref: (D_in, H)      VMEM (pre-transposed, resident across tiles)
    b1_ref: (1, H)         VMEM (f32)
    w2_ref: (H, D_out)     VMEM (pre-transposed, resident across tiles)
    b2_ref: (1, D_out)     VMEM (f32)
    o_ref:  (tm, D_out)    VMEM
    """
    # fc1: plain (tm, D_in) x (D_in, H) contraction over RHS leading axis.
    h = jnp.dot(x_ref[...], w1_ref[...], preferred_element_type=jnp.float32)
    # bias + ReLU on the VPU; hidden stays in vregs (no VMEM round trip).
    h = jnp.maximum(h + b1_ref[...], 0.0)

    # fc2: (tm, H) x (H, D_out).  Cast h to the weight dtype so the bf16 MXU
    # path is used when weights are bf16 (no-op when weights are f32).
    out = jnp.dot(h.astype(w2_ref.dtype), w2_ref[...],
                  preferred_element_type=jnp.float32)
    o_ref[...] = (out + b2_ref[...]).astype(o_ref.dtype)


def one_hidden_layer_fc_forward(x, w1, b1, w2, b2, *, use_bf16=False):
    """y = relu(x @ w1.T + b1) @ w2.T + b2   (PyTorch OneHiddenLayerFc).

    x:  (B, D_in)   float32
    w1: (H, D_in)   float32  (PyTorch nn.Linear layout)
    b1: (H,)        float32
    w2: (D_out, H)  float32  (PyTorch nn.Linear layout)
    b2: (D_out,)    float32
    returns (B, D_out) float32
    """
    B, D_in = x.shape
    H = w1.shape[0]
    D_out = w2.shape[0]

    # One-time weight transpose to (in, out) layout.  In a real model this
    # (and the optional bf16 cast) would be done once at parameter creation.
    w1t = w1.T                      # (D_in, H)
    w2t = w2.T                      # (H, D_out)
    b1r = b1.reshape(1, H).astype(jnp.float32)
    b2r = b2.reshape(1, D_out).astype(jnp.float32)

    if use_bf16:
        x_in = x.astype(jnp.bfloat16)
        w1t = w1t.astype(jnp.bfloat16)
        w2t = w2t.astype(jnp.bfloat16)
    else:
        x_in = x

    # Batch tile: sublane-aligned, up to 512 rows; prefer >=2 grid steps when
    # the batch is large enough so v7x's two TensorCores both get work.
    tm = _round_up(B, 8)
    if tm > 512:
        n_tiles = max(2, pl.cdiv(B, 512))
        tm = _round_up(pl.cdiv(B, n_tiles), 8)
    B_p = _round_up(B, tm)
    if B_p != B:
        # Zero rows contribute nothing; sliced off after the call.
        x_in = jnp.pad(x_in, ((0, B_p - B), (0, 0)))

    grid = (B_p // tm,)

    # VMEM budget: double-buffered x / out tiles + hidden value + resident
    # (double-buffered) params.  Clamp to stay well inside v7x's 64 MiB.
    itemsize = 2 if use_bf16 else 4
    tile_bytes = (2 * tm * D_in * itemsize           # x tiles (double-buffered)
                  + 2 * tm * D_out * 4               # out tiles
                  + tm * H * 4                       # hidden value
                  + 2 * ((D_in * H + H * D_out) * itemsize
                         + (H + D_out) * 4))         # weights + biases
    vmem_limit = int(min(max(2 * tile_bytes, 16 << 20), 48 << 20))

    cost = pl.CostEstimate(
        flops=2 * B * (D_in * H + H * D_out),
        transcendentals=0,
        bytes_accessed=(B * D_in * itemsize
                        + (D_in * H + H * D_out) * itemsize
                        + (H + D_out) * 4
                        + B * D_out * 4),
    )

    out_p = pl.pallas_call(
        _fused_fc_kernel,
        out_shape=jax.ShapeDtypeStruct((B_p, D_out), x.dtype),
        grid_spec=pltpu.PrefetchScalarGridSpec(
            num_scalar_prefetch=0,
            grid=grid,
            in_specs=[
                # Block dims equal full array dims for all feature axes ->
                # (8,128) divisibility is waived; Mosaic pads in vregs.
                pl.BlockSpec((tm, D_in), lambda i: (i, 0)),     # x tile
                pl.BlockSpec((D_in, H), lambda i: (0, 0)),      # W1t (resident)
                pl.BlockSpec((1, H), lambda i: (0, 0)),         # b1
                pl.BlockSpec((H, D_out), lambda i: (0, 0)),     # W2t (resident)
                pl.BlockSpec((1, D_out), lambda i: (0, 0)),     # b2
            ],
            out_specs=pl.BlockSpec((tm, D_out), lambda i: (i, 0)),
        ),
        compiler_params=pltpu.CompilerParams(
            # Batch axis is independent -> shard across TCs on v7x megacore.
            dimension_semantics=("parallel",),
            vmem_limit_bytes=vmem_limit,
        ),
        cost_estimate=cost,
    )(x_in, w1t, b1r, w2t, b2r)

    # Strip batch padding only (output feature dim is stored unpadded).
    return out_p[:B] if B_p != B else out_p


if __name__ == "__main__":
    # Shapes consistent with OneHiddenLayerFc(input_shape=32, out_dim=16,
    # mid_dim=100): x is (B, 32), hidden 100, output 16.
    B, D_in, H, D_out = 8, 32, 100, 16

    key = jax.random.PRNGKey(0)
    kx, kw1, kb1, kw2, kb2 = jax.random.split(key, 5)

    x = jax.random.normal(kx, (B, D_in), dtype=jnp.float32)

    # Deterministic "Kaiming-uniform-like" init, PyTorch nn.Linear layout.
    bound1 = 1.0 / (D_in ** 0.5)
    w1 = jax.random.uniform(kw1, (H, D_in), jnp.float32, -bound1, bound1)
    b1 = jax.random.uniform(kb1, (H,), jnp.float32, -bound1, bound1)
    bound2 = 1.0 / (H ** 0.5)
    w2 = jax.random.uniform(kw2, (D_out, H), jnp.float32, -bound2, bound2)
    b2 = jax.random.uniform(kb2, (D_out,), jnp.float32, -bound2, bound2)

    # Reference (plain JAX) forward of the PyTorch module.
    def ref_fwd(x_):
        h_ = jnp.maximum(x_ @ w1.T + b1, 0.0)
        return h_ @ w2.T + b2

    # --- small batch (single grid step) ---
    y = one_hidden_layer_fc_forward(x, w1, b1, w2, b2)
    jax.block_until_ready(y)
    assert y.shape == (B, D_out)
    assert jnp.allclose(y, ref_fwd(x), atol=1e-4, rtol=1e-4)

    # --- larger, non-aligned batch: exercises batch padding + 2-step grid ---
    B2 = 700
    x2 = jax.random.normal(jax.random.PRNGKey(1), (B2, D_in), dtype=jnp.float32)
    y2 = one_hidden_layer_fc_forward(x2, w1, b1, w2, b2)
    jax.block_until_ready(y2)
    assert y2.shape == (B2, D_out)
    assert jnp.allclose(y2, ref_fwd(x2), atol=1e-4, rtol=1e-4)

    print("KERNEL_OK")
</pallas_src>

<mosaic_0001>
module attributes {stable_mosaic.version = 11 : i64} {
  func.func @_fused_fc_kernel(%arg0: i32, %arg1: memref<8x32xf32, #tpu.memory_space<vmem>>, %arg2: memref<32x100xf32, #tpu.memory_space<vmem>>, %arg3: memref<1x100xf32, #tpu.memory_space<vmem>>, %arg4: memref<100x16xf32, #tpu.memory_space<vmem>>, %arg5: memref<1x16xf32, #tpu.memory_space<vmem>>, %arg6: memref<8x16xf32, #tpu.memory_space<vmem>>) attributes {dimension_semantics = [#tpu.dimension_semantics<parallel>], iteration_bounds = array<i64: 1>, scalar_prefetch = 0 : i64, scratch_operands = 0 : i64, tpu.core_type = #tpu.core_type<tc>, window_params = [{transform_indices = @transform_0, window_bounds = array<i64: 8, 32>}, {pipeline_mode = #tpu.pipeline_mode<synchronous>, transform_indices = @transform_1, window_bounds = array<i64: 32, 100>}, {pipeline_mode = #tpu.pipeline_mode<synchronous>, transform_indices = @transform_2, window_bounds = array<i64: 1, 100>}, {pipeline_mode = #tpu.pipeline_mode<synchronous>, transform_indices = @transform_3, window_bounds = array<i64: 100, 16>}, {pipeline_mode = #tpu.pipeline_mode<synchronous>, transform_indices = @transform_4, window_bounds = array<i64: 1, 16>}, {transform_indices = @transform_5, window_bounds = array<i64: 8, 16>}]} {
    %c0 = arith.constant 0 : index
    %c0_0 = arith.constant 0 : index
    %0 = vector.load %arg1[%c0, %c0_0] : memref<8x32xf32, #tpu.memory_space<vmem>>, vector<8x32xf32>
    %c0_1 = arith.constant 0 : index
    %c0_2 = arith.constant 0 : index
    %1 = vector.load %arg2[%c0_1, %c0_2] : memref<32x100xf32, #tpu.memory_space<vmem>>, vector<32x100xf32>
    %cst = arith.constant dense<0.000000e+00> : vector<8x100xf32>
    %2 = tpu.matmul %0, %1, %cst {dimension_numbers = #tpu.dot_dimension_numbers<[1], [0], [0], [1], [0, 0, 1, 1], [], []>} : vector<8x32xf32>, vector<32x100xf32>, vector<8x100xf32> -> vector<8x100xf32>
    %c0_3 = arith.constant 0 : index
    %c0_4 = arith.constant 0 : index
    %3 = vector.load %arg3[%c0_3, %c0_4] : memref<1x100xf32, #tpu.memory_space<vmem>>, vector<1x100xf32>
    %4 = vector.broadcast %3 : vector<1x100xf32> to vector<8x100xf32>
    %5 = arith.addf %2, %4 : vector<8x100xf32>
    %cst_5 = arith.constant 0.000000e+00 : f32
    %6 = vector.broadcast %cst_5 : f32 to vector<8x100xf32>
    %7 = arith.maximumf %5, %6 : vector<8x100xf32>
    %c0_6 = arith.constant 0 : index
    %c0_7 = arith.constant 0 : index
    %8 = vector.load %arg4[%c0_6, %c0_7] : memref<100x16xf32, #tpu.memory_space<vmem>>, vector<100x16xf32>
    %cst_8 = arith.constant dense<0.000000e+00> : vector<8x16xf32>
    %9 = tpu.matmul %7, %8, %cst_8 {dimension_numbers = #tpu.dot_dimension_numbers<[1], [0], [0], [1], [0, 0, 1, 1], [], []>} : vector<8x100xf32>, vector<100x16xf32>, vector<8x16xf32> -> vector<8x16xf32>
    %c0_9 = arith.constant 0 : index
    %c0_10 = arith.constant 0 : index
    %10 = vector.load %arg5[%c0_9, %c0_10] : memref<1x16xf32, #tpu.memory_space<vmem>>, vector<1x16xf32>
    %11 = vector.broadcast %10 : vector<1x16xf32> to vector<8x16xf32>
    %12 = arith.addf %9, %11 : vector<8x16xf32>
    %c0_11 = arith.constant 0 : index
    %c0_12 = arith.constant 0 : index
    %13 = vector.load %arg6[%c0_11, %c0_12] : memref<8x16xf32, #tpu.memory_space<vmem>>, vector<8x16xf32>
    tpu.vector_store %arg6[%c0_11, %c0_12], %12 {strides = array<i32>} : memref<8x16xf32, #tpu.memory_space<vmem>>, vector<8x16xf32>,
    return
  }
  func.func @transform_0(%arg0: i32) -> (i32, i32) {
    %c0_i32 = arith.constant 0 : i32
    %c0_i32_0 = arith.constant 0 : i32
    return %arg0, %c0_i32 : i32, i32
  }
  func.func @transform_1(%arg0: i32) -> (i32, i32) {
    %c0_i32 = arith.constant 0 : i32
    %c0_i32_0 = arith.constant 0 : i32
    %c0_i32_1 = arith.constant 0 : i32
    return %c0_i32, %c0_i32_0 : i32, i32
  }
  func.func @transform_2(%arg0: i32) -> (i32, i32) {
    %c0_i32 = arith.constant 0 : i32
    %c0_i32_0 = arith.constant 0 : i32
    %c0_i32_1 = arith.constant 0 : i32
    return %c0_i32, %c0_i32_0 : i32, i32
  }
  func.func @transform_3(%arg0: i32) -> (i32, i32) {
    %c0_i32 = arith.constant 0 : i32
    %c0_i32_0 = arith.constant 0 : i32
    %c0_i32_1 = arith.constant 0 : i32
    return %c0_i32, %c0_i32_0 : i32, i32
  }
  func.func @transform_4(%arg0: i32) -> (i32, i32) {
    %c0_i32 = arith.constant 0 : i32
    %c0_i32_0 = arith.constant 0 : i32
    %c0_i32_1 = arith.constant 0 : i32
    return %c0_i32, %c0_i32_0 : i32, i32
  }
  func.func @transform_5(%arg0: i32) -> (i32, i32) {
    %c0_i32 = arith.constant 0 : i32
    %c0_i32_0 = arith.constant 0 : i32
    return %arg0, %c0_i32 : i32, i32
  }
}

</mosaic_0001>

<llo_original>
// kernel: tpu_custom_call.1
$region0: #{tpu_custom_call.1}
  #allocation0 [shape = 'u32[]', space=smem, size = 0x4, offset = 0x4, fixed_abs, tag = 'smem constant byte address 0x4 - core index']
  #allocation1 [shape = 'u32[144,128]{1,0:T(1,128)}', space=vmem, size = 0x12000, scoped, tag = 'internal scratch']
  %s0 = inlined_call_operand.vmem [shape: f32[8,32], index: 0, kind: input, shape index: {}]
  %s1 = inlined_call_operand.vmem [shape: f32[32,100], index: 1, kind: input, shape index: {}]
  %s2 = inlined_call_operand.vmem [shape: f32[1,100], index: 2, kind: input, shape index: {}]
  %s3 = inlined_call_operand.vmem [shape: f32[100,16], index: 3, kind: input, shape index: {}]
  %s4 = inlined_call_operand.vmem [shape: f32[1,16], index: 4, kind: input, shape index: {}]
  %s5 = inlined_call_operand.hbm [shape: f32[8,16], index: 5, kind: output, shape index: {}]
  %s6 = sld [smem:[#allocation0]]
  $region30: #{tpu_custom_call.1} parent=0
    _
  %s8 = ssub.s32 1, %s6
  %s9 = scalar_select 0, %s8, %s6
  $region1: #{tpu_custom_call.1} parent=0
    #allocation2 [shape = 'u8[4096]{0}', space=vmem, size = 0x1000, scoped, tag = 'output window, operand 0, single buffered']
    #allocation3 [shape = 's32[1]{0}', space=sflag, size = 0x4, scoped, tag = 'scoped memory for tpu_custom_call.1']
    %10 = vsyncpa [#allocation3], 0
    // Predicated region
    $region2: #{tpu_custom_call.1} parent=1 // pred_check
      _
    $region3: #{tpu_custom_call.1} parent=1 // pred_check_branch
      %12 = sbr.rel (0) target = $region5
    $region4: #{tpu_custom_call.1} parent=1 // pred_region
      _
    $region5: #{tpu_custom_call.1} parent=1 // pred_fallthru
      _
    // Predicated region
    $region6: #{tpu_custom_call.1} parent=1 // pred_check
      _
    $region7: #{tpu_custom_call.1} parent=1 // pred_check_branch
      %14 = sbr.rel (0) target = $region9
    $region8: #{tpu_custom_call.1} parent=1 // pred_region
      _
    $region9: #{tpu_custom_call.1} parent=1 // pred_fallthru
      _
    // Predicated region
    $region10: #{tpu_custom_call.1} parent=1 // pred_check
      _
    $region11: #{tpu_custom_call.1} parent=1 // pred_check_branch
      %16 = sbr.rel (0) target = $region13
    $region12: #{tpu_custom_call.1} parent=1 // pred_region
      _
    $region13: #{tpu_custom_call.1} parent=1 // pred_fallthru
      _
    // Predicated region
    $region14: #{tpu_custom_call.1} parent=1 // pred_check
      _
    $region15: #{tpu_custom_call.1} parent=1 // pred_check_branch
      %18 = sbr.rel (0) target = $region17
    $region16: #{tpu_custom_call.1} parent=1 // pred_region
      _
    $region17: #{tpu_custom_call.1} parent=1 // pred_fallthru
      _
    // Predicated region
    $region18: #{tpu_custom_call.1} parent=1 // pred_check
      _
    $region19: #{tpu_custom_call.1} parent=1 // pred_check_branch
      %20 = sbr.rel (0) target = $region21
    $region20: #{tpu_custom_call.1} parent=1 // pred_region
      _
    $region21: #{tpu_custom_call.1} parent=1 // pred_fallthru
      _
    %v21 = vld [vmem:[%s0] sm:$0xff]
    %v22 = vld [vmem:[%s1] sm:$0xff]
    %v23 = vld [vmem:[%s1 + $0x8] sm:$0xff]
    %v24 = vld [vmem:[%s1 + $0x10] sm:$0xff]
    %v25 = vld [vmem:[%s1 + $0x18] sm:$0xff]
    %v26 = vld [vmem:[%s2] sm:$0x1]
    %v28 = vlaneseq
    %v29 = vshrl.u32 %v28, 7
    %v30 = vsub.s32 0, %v29
    %v31 = vrot.slane %v26, %v30
    %vm33 = vcmask 261120
    %v35 = vsel %vm33, %v21, 0
    %37 = vmatprep.subr.mxu0 0.0
    %38 = vmatpush1.msra.mxu0 %v22
    %39 = vmatprep.subr.mxu0 0.0
    %40 = vmatpush1.msra.mxu0 %v23
    %41 = vmatprep.subr.mxu0 0.0
    %42 = vmatpush1.msra.mxu0 %v24
    %43 = vmatprep.subr.mxu0 0.0
    %44 = vmatpush1.msra.mxu0 %v25
    %45 = vmatprep.subr.mxu0 0.0
    %46 = vmatpush1.msra.mxu0 0.0
    %47 = vmatprep.subr.mxu0 0.0
    %48 = vmatpush1.msra.mxu0 0.0
    %49 = vmatprep.subr.mxu0 0.0
    %50 = vmatpush1.msra.mxu0 0.0
    %51 = vmatprep.subr.mxu0 0.0
    %52 = vmatpush1.msra.mxu0 0.0
    %53 = vmatprep.subr.mxu0 0.0
    %54 = vmatpush1.msra.mxu0 0.0
    %55 = vmatprep.subr.mxu0 0.0
    %56 = vmatpush1.msra.mxu0 0.0
    %57 = vmatprep.subr.mxu0 0.0
    %58 = vmatpush1.msra.mxu0 0.0
    %59 = vmatprep.subr.mxu0 0.0
    %60 = vmatpush1.msra.mxu0 0.0
    %61 = vmatprep.subr.mxu0 0.0
    %62 = vmatpush1.msra.mxu0 0.0
    %63 = vmatprep.subr.mxu0 0.0
    %64 = vmatpush1.msra.mxu0 0.0
    %65 = vmatprep.subr.mxu0 0.0
    %66 = vmatpush1.msra.mxu0 0.0
    %67 = vmatprep.subr.mxu0 0.0
    %68 = vmatpush1.msra.mxu0 0.0
    %69 = vmatprep.subr.mxu0 0.0
    %70 = vmatpush1.msra.mxu0 0.0
    %71 = vmatprep.subr.mxu0 0.0
    %72 = vmatpush1.msra.mxu0 0.0
    %73 = vmatprep.subr.mxu0 0.0
    %74 = vmatpush1.msra.mxu0 0.0
    %75 = vmatprep.subr.mxu0 0.0
    %76 = vmatpush1.msra.mxu0 0.0
    %77 = vmatprep.subr.mxu0 0.0
    %78 = vmatpush1.msra.mxu0 0.0
    %79 = vmatprep.subr.mxu0 0.0
    %80 = vmatpush1.msra.mxu0 0.0
    %81 = vmatprep.subr.mxu0 0.0
    %82 = vmatpush1.msra.mxu0 0.0
    %83 = vmatprep.subr.mxu0 0.0
    %84 = vmatpush1.msra.mxu0 0.0
    %85 = vmatprep.subr.mxu0 0.0
    %86 = vmatpush1.msra.mxu0 0.0
    %87 = vmatprep.subr.mxu0 0.0
    %88 = vmatpush1.msra.mxu0 0.0
    %89 = vmatprep.subr.mxu0 0.0
    %90 = vmatpush1.msra.mxu0 0.0
    %91 = vmatprep.subr.mxu0 0.0
    %92 = vmatpush1.msra.mxu0 0.0
    %93 = vmatprep.subr.mxu0 0.0
    %94 = vmatpush1.msra.mxu0 0.0
    %95 = vmatprep.subr.mxu0 0.0
    %96 = vmatpush1.msra.mxu0 0.0
    %97 = vmatprep.subr.mxu0 0.0
    %98 = vmatpush1.msra.mxu0 0.0
    %99 = vmatprep.subr.mxu0 0.0
    %100 = vmatpush1.msra.mxu0 0.0
    %101 = vmatprep.mubr.f32.mxu0 0.0
    %102 = vmatmul.mubr.f32.gmra.mrb[0].mxu0 %v35
    %v103 = vpop.f32.mrb[0].mxu0
    %v104 = vadd.f32 %v31, %v103
    %v105 = vpop.f32.mrb[0].mxu0
    %106 = vdwg.mxu0
    %v107 = vmax.f32 %v104, 0.0
    %v108 = vld [vmem:[%s3] sm:$0xff]
    %v109 = vld [vmem:[%s3 + $0x8] sm:$0xff]
    %v110 = vld [vmem:[%s3 + $0x10] sm:$0xff]
    %v111 = vld [vmem:[%s3 + $0x18] sm:$0xff]
    %v112 = vld [vmem:[%s3 + $0x20] sm:$0xff]
    %v113 = vld [vmem:[%s3 + $0x28] sm:$0xff]
    %v114 = vld [vmem:[%s3 + $0x30] sm:$0xff]
    %v115 = vld [vmem:[%s3 + $0x38] sm:$0xff]
    %v116 = vld [vmem:[%s3 + $0x40] sm:$0xff]
    %v117 = vld [vmem:[%s3 + $0x48] sm:$0xff]
    %v118 = vld [vmem:[%s3 + $0x50] sm:$0xff]
    %v119 = vld [vmem:[%s3 + $0x58] sm:$0xff]
    %v120 = vld [vmem:[%s3 + $0x60] sm:$0xf]
    %v121 = vld [vmem:[%s4] sm:$0x1]
    %v123 = vlaneseq
    %v124 = vshrl.u32 %v123, 7
    %v125 = vsub.s32 0, %v124
    %v126 = vrot.slane %v121, %v125
    %vm128 = vcmask 818176
    %v130 = vsel %vm128, %v107, 0
    %vm132 = vcmask 1043456
    %v134 = vsel %vm132, %v120, 0
    %136 = vmatprep.subr.mxu0 0.0
    %137 = vmatpush1.msra.mxu0 %v108
    %138 = vmatprep.subr.mxu0 0.0
    %139 = vmatpush1.msra.mxu0 %v109
    %140 = vmatprep.subr.mxu0 0.0
    %141 = vmatpush1.msra.mxu0 %v110
    %142 = vmatprep.subr.mxu0 0.0
    %143 = vmatpush1.msra.mxu0 %v111
    %144 = vmatprep.subr.mxu0 0.0
    %145 = vmatpush1.msra.mxu0 %v112
    %146 = vmatprep.subr.mxu0 0.0
    %147 = vmatpush1.msra.mxu0 %v113
    %148 = vmatprep.subr.mxu0 0.0
    %149 = vmatpush1.msra.mxu0 %v114
    %150 = vmatprep.subr.mxu0 0.0
    %151 = vmatpush1.msra.mxu0 %v115
    %152 = vmatprep.subr.mxu0 0.0
    %153 = vmatpush1.msra.mxu0 %v116
    %154 = vmatprep.subr.mxu0 0.0
    %155 = vmatpush1.msra.mxu0 %v117
    %156 = vmatprep.subr.mxu0 0.0
    %157 = vmatpush1.msra.mxu0 %v118
    %158 = vmatprep.subr.mxu0 0.0
    %159 = vmatpush1.msra.mxu0 %v119
    %160 = vmatprep.subr.mxu0 0.0
    %161 = vmatpush1.msra.mxu0 %v134
    %162 = vmatprep.subr.mxu0 0.0
    %163 = vmatpush1.msra.mxu0 0.0
    %164 = vmatprep.subr.mxu0 0.0
    %165 = vmatpush1.msra.mxu0 0.0
    %166 = vmatprep.subr.mxu0 0.0
    %167 = vmatpush1.msra.mxu0 0.0
    %168 = vmatprep.subr.mxu0 0.0
    %169 = vmatpush1.msra.mxu0 0.0
    %170 = vmatprep.subr.mxu0 0.0
    %171 = vmatpush1.msra.mxu0 0.0
    %172 = vmatprep.subr.mxu0 0.0
    %173 = vmatpush1.msra.mxu0 0.0
    %174 = vmatprep.subr.mxu0 0.0
    %175 = vmatpush1.msra.mxu0 0.0
    %176 = vmatprep.subr.mxu0 0.0
    %177 = vmatpush1.msra.mxu0 0.0
    %178 = vmatprep.subr.mxu0 0.0
    %179 = vmatpush1.msra.mxu0 0.0
    %180 = vmatprep.subr.mxu0 0.0
    %181 = vmatpush1.msra.mxu0 0.0
    %182 = vmatprep.subr.mxu0 0.0
    %183 = vmatpush1.msra.mxu0 0.0
    %184 = vmatprep.subr.mxu0 0.0
    %185 = vmatpush1.msra.mxu0 0.0
    %186 = vmatprep.subr.mxu0 0.0
    %187 = vmatpush1.msra.mxu0 0.0
    %188 = vmatprep.subr.mxu0 0.0
    %189 = vmatpush1.msra.mxu0 0.0
    %190 = vmatprep.subr.mxu0 0.0
    %191 = vmatpush1.msra.mxu0 0.0
    %192 = vmatprep.subr.mxu0 0.0
    %193 = vmatpush1.msra.mxu0 0.0
    %194 = vmatprep.subr.mxu0 0.0
    %195 = vmatpush1.msra.mxu0 0.0
    %196 = vmatprep.subr.mxu0 0.0
    %197 = vmatpush1.msra.mxu0 0.0
    %198 = vmatprep.subr.mxu0 0.0
    %199 = vmatpush1.msra.mxu0 0.0
    %200 = vmatprep.mubr.f32.mxu0 0.0
    %201 = vmatmul.mubr.f32.gmra.mrb[0].mxu0 %v130
    %v202 = vpop.f32.mrb[0].mxu0
    %v203 = vadd.f32 %v126, %v202
    %v204 = vpop.f32.mrb[0].mxu0
    %205 = vdwg.mxu0
    %vm206 = vcmask 130048
    %207 = vst.msk [vmem:[#allocation2] sm:$0xff] %vm206, %v203
    // Predicated region
    $region22: #{tpu_custom_call.1} parent=1 // pred_check
      _
    $region23: #{tpu_custom_call.1} parent=1 // pred_check_branch
      %209 = sbr.rel (0) target = $region25
    $region24: #{tpu_custom_call.1} parent=1 // pred_region
      %s211 = ssub.s32 128, 128
      %212 = vsyncadd [#allocation3], %s211
      %s214 = sshll.u32 [#allocation2], 4
      %s215 = int_to_ptr.vmem [resolvable:$true] %s214
      %217 = dma.vmem_to_hbm [thread:$0]  %s215, 128, %s5, [#allocation3]
    $region25: #{tpu_custom_call.1} parent=1 // pred_fallthru
      _
    // Predicated region
    $region26: #{tpu_custom_call.1} parent=1 // pred_check
      _
    $region27: #{tpu_custom_call.1} parent=1 // pred_check_branch
      %219 = sbr.rel (0) target = $region29
    $region28: #{tpu_custom_call.1} parent=1 // pred_region
      %220 = dma.done [#allocation3], 128
    $region29: #{tpu_custom_call.1} parent=1 // pred_fallthru
      _
    %221 = vsyncpa [#allocation3], 1

</llo_original>
